<compile_context>
chip_gen: v7x
topology: tpu7x:2x2x1
jax: 0.10.0
libtpu: 0.0.40
codegen_flags: <defaults>
</compile_context>

<pallas_src>
import functools

import jax
import jax.numpy as jnp
from jax.experimental import pallas as pl
from jax.experimental.pallas import tpu as pltpu


def _round_up(x, m):
    return (x + m - 1) // m * m


def _pad_lane(x, mult=128):
    """Zero-pad the last (lane) dim up to a multiple of `mult`."""
    n = x.shape[-1]
    n_pad = _round_up(n, mult)
    if n_pad != n:
        x = jnp.pad(x, [(0, 0)] * (x.ndim - 1) + [(0, n_pad - n)])
    return x


def _pick_tm(m, max_tm):
    """Row-tile size: multiple of 16 (bf16 sublane packing), capped at ~M/2 so the
    grid has >=2 steps (v7x megacore sharding), preferring a divisor of M so the
    patches matrix never needs an extra jnp.pad copy."""
    cand = min(max_tm, _round_up(m, 16))
    if m > 16:
        cand = min(cand, _round_up(-(-m // 2), 16))   # >= 2 grid steps
    cand = max(cand, 16)
    if m % 16 == 0:
        lo = max(16, (cand // 2 // 16) * 16)          # don't shrink below cand/2
        t = (cand // 16) * 16
        while t >= lo:
            if m % t == 0:
                return t
            t -= 16
    return cand


# ---------------------------------------------------------------------------
# Pallas kernel: one (TM, K) x-tile @ full (K, Npad) weight, + (1, Npad) bias,
# optional ReLU.  bf16 operands, f32 accumulate, lane-dense store in out dtype.
# ---------------------------------------------------------------------------
def _matmul_bias_act_kernel(x_ref, w_ref, b_ref, o_ref, *, relu):
    acc = jnp.dot(x_ref[...], w_ref[...], preferred_element_type=jnp.float32)
    acc = acc + b_ref[...]                      # (TM, Npad) + (1, Npad), f32
    if relu:
        acc = jnp.maximum(acc, 0.0)
    o_ref[...] = acc.astype(o_ref.dtype)        # bf16 for conv layers, f32 for FC


def matmul_bias_act(x, w_pad, b_pad, *, relu, out_dtype=jnp.float32, max_tm=512):
    """x: (M, K); w_pad: (K, Npad) bf16; b_pad: (1, Npad) f32 -> (M, Npad) out_dtype.

    Npad must be a multiple of 128 (lane-dense stores).  M is tiled with TM rows
    (multiple of 16, >=2 grid steps when possible) and zero-padded only if TM
    does not divide M.
    """
    m, k = x.shape
    k2, n_pad = w_pad.shape
    assert k == k2, (k, k2)
    assert n_pad % 128 == 0, n_pad

    # VMEM guard (v5e 16 MiB scoped / v7x 32 MiB): keep the double-buffered
    # bf16 x tile under ~4 MiB regardless of K (matters for the FC `flat` dim).
    rows_budget = max(16, ((4 << 20) // (4 * k)) // 16 * 16)
    tm = _pick_tm(m, min(max_tm, rows_budget))
    m_pad = _round_up(m, tm)

    if x.dtype != jnp.bfloat16:
        x = x.astype(jnp.bfloat16)
    if m_pad != m:
        x = jnp.pad(x, ((0, m_pad - m), (0, 0)))

    kernel = functools.partial(_matmul_bias_act_kernel, relu=relu)
    out = pl.pallas_call(
        kernel,
        out_shape=jax.ShapeDtypeStruct((m_pad, n_pad), out_dtype),
        grid=(m_pad // tm,),
        in_specs=[
            pl.BlockSpec((tm, k), lambda i: (i, 0)),
            pl.BlockSpec((k, n_pad), lambda i: (0, 0)),
            pl.BlockSpec((1, n_pad), lambda i: (0, 0)),
        ],
        out_specs=pl.BlockSpec((tm, n_pad), lambda i: (i, 0)),
        compiler_params=pltpu.CompilerParams(
            dimension_semantics=("parallel",)),
    )(x, w_pad, b_pad)
    return out[:m]                              # caller slices padded N columns


# ---------------------------------------------------------------------------
# NHWC im2col (plain JAX, channel-last concat only -> no stack/6-D transpose),
# operating on bf16 activations.  K ordering of the patch axis is (kh, kw, c);
# conv weights are permuted to match once at init.
# TODO(synk): overlapping strided-window patch extraction stays in JAX; an
# implicit-GEMM in-kernel gather (assembling (tm, k*k*C) patches in VMEM) would
# remove the ~4x-duplicated HBM patches matrix but has no clean BlockSpec form.
# ---------------------------------------------------------------------------
def im2col_nhwc(x, k, stride):
    n, h, w, c = x.shape
    oh = (h - k) // stride + 1
    ow = (w - k) // stride + 1
    cols = []
    for kh in range(k):
        for kw in range(k):
            cols.append(
                x[:, kh:kh + stride * oh:stride, kw:kw + stride * ow:stride, :])
    patches = jnp.concatenate(cols, axis=-1)            # (N, OH, OW, k*k*C) bf16
    return patches.reshape(n * oh * ow, k * k * c), oh, ow


def conv2d_bias_relu(x_nhwc, w_pad, b_pad, *, k, stride, out_ch):
    n = x_nhwc.shape[0]
    patches, oh, ow = im2col_nhwc(x_nhwc, k, stride)     # (N*OH*OW, k*k*C) bf16
    y = matmul_bias_act(patches, w_pad, b_pad, relu=True,
                        out_dtype=jnp.bfloat16, max_tm=1024)  # (N*OH*OW, Npad) bf16
    return y[:, :out_ch].reshape(n, oh, ow, out_ch)      # stay NHWC, bf16


# ---------------------------------------------------------------------------
# Parameters: init in PyTorch layout, then convert ONCE to kernel layout.
# ---------------------------------------------------------------------------
def dqn_init_torch_layout(key, input_shape, n_actions):
    c, h, w = input_shape
    oh1, ow1 = (h - 8) // 4 + 1, (w - 8) // 4 + 1
    oh2, ow2 = (oh1 - 4) // 2 + 1, (ow1 - 4) // 2 + 1
    flat = 64 * oh2 * ow2
    ks = jax.random.split(key, 6)
    return {
        "w1": jax.random.normal(ks[0], (32, c, 8, 8), jnp.float32) * 0.05,
        "b1": jax.random.normal(ks[1], (32,), jnp.float32) * 0.05,
        "w2": jax.random.normal(ks[2], (64, 32, 4, 4), jnp.float32) * 0.05,
        "b2": jax.random.normal(ks[3], (64,), jnp.float32) * 0.05,
        "fc_w": jax.random.normal(ks[4], (n_actions, flat), jnp.float32) * 0.05,
        "fc_b": jax.random.normal(ks[5], (n_actions,), jnp.float32) * 0.05,
    }


def prepare_params(tp, input_shape):
    """PyTorch-layout params -> pre-transposed / pre-padded / bf16 kernel params."""
    _, h, w = input_shape
    oh1, ow1 = (h - 8) // 4 + 1, (w - 8) // 4 + 1
    oh2, ow2 = (oh1 - 4) // 2 + 1, (ow1 - 4) // 2 + 1

    def conv_w(wt):  # (O, C, k, k) -> (k*k*C, round_up(O,128)) bf16, (kh,kw,c) row order
        o, ci, k, _ = wt.shape
        w2d = jnp.transpose(wt, (2, 3, 1, 0)).reshape(k * k * ci, o)
        return _pad_lane(w2d).astype(jnp.bfloat16)

    def bias(bt):    # (N,) -> (1, round_up(N,128)) f32
        return _pad_lane(bt.reshape(1, -1)).astype(jnp.float32)

    # fc weight: PyTorch flatten order is (c, h, w); ours (NHWC) is (h, w, c).
    fc_w = tp["fc_w"]
    a = fc_w.shape[0]
    fc_w = fc_w.reshape(a, 64, oh2, ow2).transpose(0, 2, 3, 1).reshape(a, -1).T

    return {
        "w1": conv_w(tp["w1"]), "b1": bias(tp["b1"]),
        "w2": conv_w(tp["w2"]), "b2": bias(tp["b2"]),
        "fc_w": _pad_lane(fc_w).astype(jnp.bfloat16),
        "fc_b": bias(tp["fc_b"]),
    }


# ---------------------------------------------------------------------------
# DQN forward
# ---------------------------------------------------------------------------
def dqn_forward(params, state_nchw, n_actions):
    """state: (N, C, H, W) f32 -> q_values: (N, n_actions) f32."""
    # NCHW -> NHWC once, cast to bf16 BEFORE im2col so the ~4x-duplicated patch
    # matrix and all inter-layer activations move through HBM at half width.
    x = jnp.transpose(state_nchw, (0, 2, 3, 1)).astype(jnp.bfloat16)
    x = conv2d_bias_relu(x, params["w1"], params["b1"], k=8, stride=4, out_ch=32)
    x = conv2d_bias_relu(x, params["w2"], params["b2"], k=4, stride=2, out_ch=64)
    n = x.shape[0]
    x = x.reshape(n, -1)                                  # NHWC flatten (fc_w permuted to match), bf16
    q = matmul_bias_act(x, params["fc_w"], params["fc_b"],
                        relu=False, out_dtype=jnp.float32, max_tm=512)
    return q[:, :n_actions]


if __name__ == "__main__":
    key = jax.random.PRNGKey(0)
    k_params, k_state = jax.random.split(key)

    # small shapes: batch=2, channels=4, spatial 28x28 -> conv1 6x6 -> conv2 2x2
    input_shape = (4, 28, 28)
    n_actions = 6
    batch = 2

    torch_params = dqn_init_torch_layout(k_params, input_shape, n_actions)
    params = prepare_params(torch_params, input_shape)
    state = jax.random.normal(k_state, (batch,) + input_shape, jnp.float32)

    fwd = jax.jit(functools.partial(dqn_forward, n_actions=n_actions))
    q_values = jax.block_until_ready(fwd(params, state))

    assert q_values.shape == (batch, n_actions), q_values.shape
    assert q_values.dtype == jnp.float32, q_values.dtype
    assert bool(jnp.all(jnp.isfinite(q_values)))
    print("KERNEL_OK")
</pallas_src>

<mosaic_0001>
module attributes {stable_mosaic.version = 11 : i64} {
  func.func @_matmul_bias_act_kernel(%arg0: i32, %arg1: memref<48x256xbf16, #tpu.memory_space<vmem>>, %arg2: memref<256x128xbf16, #tpu.memory_space<vmem>>, %arg3: memref<1x128xf32, #tpu.memory_space<vmem>>, %arg4: memref<48x128xbf16, #tpu.memory_space<vmem>>) attributes {dimension_semantics = [#tpu.dimension_semantics<parallel>], iteration_bounds = array<i64: 2>, scalar_prefetch = 0 : i64, scratch_operands = 0 : i64, tpu.core_type = #tpu.core_type<tc>, window_params = [{transform_indices = @transform_0, window_bounds = array<i64: 48, 256>}, {pipeline_mode = #tpu.pipeline_mode<synchronous>, transform_indices = @transform_1, window_bounds = array<i64: 256, 128>}, {pipeline_mode = #tpu.pipeline_mode<synchronous>, transform_indices = @transform_2, window_bounds = array<i64: 1, 128>}, {transform_indices = @transform_3, window_bounds = array<i64: 48, 128>}]} {
    %c0 = arith.constant 0 : index
    %c0_0 = arith.constant 0 : index
    %0 = vector.load %arg1[%c0, %c0_0] : memref<48x256xbf16, #tpu.memory_space<vmem>>, vector<48x256xbf16>
    %c0_1 = arith.constant 0 : index
    %c0_2 = arith.constant 0 : index
    %1 = vector.load %arg2[%c0_1, %c0_2] : memref<256x128xbf16, #tpu.memory_space<vmem>>, vector<256x128xbf16>
    %cst = arith.constant dense<0.000000e+00> : vector<48x128xf32>
    %2 = tpu.matmul %0, %1, %cst {dimension_numbers = #tpu.dot_dimension_numbers<[1], [0], [0], [1], [0, 0, 1, 1], [], []>} : vector<48x256xbf16>, vector<256x128xbf16>, vector<48x128xf32> -> vector<48x128xf32>
    %c0_3 = arith.constant 0 : index
    %c0_4 = arith.constant 0 : index
    %3 = vector.load %arg3[%c0_3, %c0_4] : memref<1x128xf32, #tpu.memory_space<vmem>>, vector<1x128xf32>
    %4 = vector.broadcast %3 : vector<1x128xf32> to vector<48x128xf32>
    %5 = arith.addf %2, %4 : vector<48x128xf32>
    %cst_5 = arith.constant 0.000000e+00 : f32
    %6 = vector.broadcast %cst_5 : f32 to vector<48x128xf32>
    %7 = arith.maximumf %5, %6 : vector<48x128xf32>
    %8 = arith.truncf %7 : vector<48x128xf32> to vector<48x128xbf16>
    %c0_6 = arith.constant 0 : index
    %c0_7 = arith.constant 0 : index
    %9 = vector.load %arg4[%c0_6, %c0_7] : memref<48x128xbf16, #tpu.memory_space<vmem>>, vector<48x128xbf16>
    tpu.vector_store %arg4[%c0_6, %c0_7], %8 {strides = array<i32>} : memref<48x128xbf16, #tpu.memory_space<vmem>>, vector<48x128xbf16>,
    return
  }
  func.func @transform_0(%arg0: i32) -> (i32, i32) {
    %c0_i32 = arith.constant 0 : i32
    %c0_i32_0 = arith.constant 0 : i32
    return %arg0, %c0_i32 : i32, i32
  }
  func.func @transform_1(%arg0: i32) -> (i32, i32) {
    %c0_i32 = arith.constant 0 : i32
    %c0_i32_0 = arith.constant 0 : i32
    %c0_i32_1 = arith.constant 0 : i32
    return %c0_i32, %c0_i32_0 : i32, i32
  }
  func.func @transform_2(%arg0: i32) -> (i32, i32) {
    %c0_i32 = arith.constant 0 : i32
    %c0_i32_0 = arith.constant 0 : i32
    %c0_i32_1 = arith.constant 0 : i32
    return %c0_i32, %c0_i32_0 : i32, i32
  }
  func.func @transform_3(%arg0: i32) -> (i32, i32) {
    %c0_i32 = arith.constant 0 : i32
    %c0_i32_0 = arith.constant 0 : i32
    return %arg0, %c0_i32 : i32, i32
  }
}

module attributes {stable_mosaic.version = 11 : i64} {
  func.func @_matmul_bias_act_kernel(%arg0: i32, %arg1: memref<16x512xbf16, #tpu.memory_space<vmem>>, %arg2: memref<512x128xbf16, #tpu.memory_space<vmem>>, %arg3: memref<1x128xf32, #tpu.memory_space<vmem>>, %arg4: memref<16x128xbf16, #tpu.memory_space<vmem>>) attributes {dimension_semantics = [#tpu.dimension_semantics<parallel>], iteration_bounds = array<i64: 1>, scalar_prefetch = 0 : i64, scratch_operands = 0 : i64, tpu.core_type = #tpu.core_type<tc>, window_params = [{transform_indices = @transform_0, window_bounds = array<i64: 16, 512>}, {pipeline_mode = #tpu.pipeline_mode<synchronous>, transform_indices = @transform_1, window_bounds = array<i64: 512, 128>}, {pipeline_mode = #tpu.pipeline_mode<synchronous>, transform_indices = @transform_2, window_bounds = array<i64: 1, 128>}, {transform_indices = @transform_3, window_bounds = array<i64: 16, 128>}]} {
    %c0 = arith.constant 0 : index
    %c0_0 = arith.constant 0 : index
    %0 = vector.load %arg1[%c0, %c0_0] : memref<16x512xbf16, #tpu.memory_space<vmem>>, vector<16x512xbf16>
    %c0_1 = arith.constant 0 : index
    %c0_2 = arith.constant 0 : index
    %1 = vector.load %arg2[%c0_1, %c0_2] : memref<512x128xbf16, #tpu.memory_space<vmem>>, vector<512x128xbf16>
    %cst = arith.constant dense<0.000000e+00> : vector<16x128xf32>
    %2 = tpu.matmul %0, %1, %cst {dimension_numbers = #tpu.dot_dimension_numbers<[1], [0], [0], [1], [0, 0, 1, 1], [], []>} : vector<16x512xbf16>, vector<512x128xbf16>, vector<16x128xf32> -> vector<16x128xf32>
    %c0_3 = arith.constant 0 : index
    %c0_4 = arith.constant 0 : index
    %3 = vector.load %arg3[%c0_3, %c0_4] : memref<1x128xf32, #tpu.memory_space<vmem>>, vector<1x128xf32>
    %4 = vector.broadcast %3 : vector<1x128xf32> to vector<16x128xf32>
    %5 = arith.addf %2, %4 : vector<16x128xf32>
    %cst_5 = arith.constant 0.000000e+00 : f32
    %6 = vector.broadcast %cst_5 : f32 to vector<16x128xf32>
    %7 = arith.maximumf %5, %6 : vector<16x128xf32>
    %8 = arith.truncf %7 : vector<16x128xf32> to vector<16x128xbf16>
    %c0_6 = arith.constant 0 : index
    %c0_7 = arith.constant 0 : index
    %9 = vector.load %arg4[%c0_6, %c0_7] : memref<16x128xbf16, #tpu.memory_space<vmem>>, vector<16x128xbf16>
    tpu.vector_store %arg4[%c0_6, %c0_7], %8 {strides = array<i32>} : memref<16x128xbf16, #tpu.memory_space<vmem>>, vector<16x128xbf16>,
    return
  }
  func.func @transform_0(%arg0: i32) -> (i32, i32) {
    %c0_i32 = arith.constant 0 : i32
    %c0_i32_0 = arith.constant 0 : i32
    return %arg0, %c0_i32 : i32, i32
  }
  func.func @transform_1(%arg0: i32) -> (i32, i32) {
    %c0_i32 = arith.constant 0 : i32
    %c0_i32_0 = arith.constant 0 : i32
    %c0_i32_1 = arith.constant 0 : i32
    return %c0_i32, %c0_i32_0 : i32, i32
  }
  func.func @transform_2(%arg0: i32) -> (i32, i32) {
    %c0_i32 = arith.constant 0 : i32
    %c0_i32_0 = arith.constant 0 : i32
    %c0_i32_1 = arith.constant 0 : i32
    return %c0_i32, %c0_i32_0 : i32, i32
  }
  func.func @transform_3(%arg0: i32) -> (i32, i32) {
    %c0_i32 = arith.constant 0 : i32
    %c0_i32_0 = arith.constant 0 : i32
    return %arg0, %c0_i32 : i32, i32
  }
}

module attributes {stable_mosaic.version = 11 : i64} {
  func.func @_matmul_bias_act_kernel(%arg0: i32, %arg1: memref<16x256xbf16, #tpu.memory_space<vmem>>, %arg2: memref<256x128xbf16, #tpu.memory_space<vmem>>, %arg3: memref<1x128xf32, #tpu.memory_space<vmem>>, %arg4: memref<16x128xf32, #tpu.memory_space<vmem>>) attributes {dimension_semantics = [#tpu.dimension_semantics<parallel>], iteration_bounds = array<i64: 1>, scalar_prefetch = 0 : i64, scratch_operands = 0 : i64, tpu.core_type = #tpu.core_type<tc>, window_params = [{transform_indices = @transform_0, window_bounds = array<i64: 16, 256>}, {pipeline_mode = #tpu.pipeline_mode<synchronous>, transform_indices = @transform_1, window_bounds = array<i64: 256, 128>}, {pipeline_mode = #tpu.pipeline_mode<synchronous>, transform_indices = @transform_2, window_bounds = array<i64: 1, 128>}, {transform_indices = @transform_3, window_bounds = array<i64: 16, 128>}]} {
    %c0 = arith.constant 0 : index
    %c0_0 = arith.constant 0 : index
    %0 = vector.load %arg1[%c0, %c0_0] : memref<16x256xbf16, #tpu.memory_space<vmem>>, vector<16x256xbf16>
    %c0_1 = arith.constant 0 : index
    %c0_2 = arith.constant 0 : index
    %1 = vector.load %arg2[%c0_1, %c0_2] : memref<256x128xbf16, #tpu.memory_space<vmem>>, vector<256x128xbf16>
    %cst = arith.constant dense<0.000000e+00> : vector<16x128xf32>
    %2 = tpu.matmul %0, %1, %cst {dimension_numbers = #tpu.dot_dimension_numbers<[1], [0], [0], [1], [0, 0, 1, 1], [], []>} : vector<16x256xbf16>, vector<256x128xbf16>, vector<16x128xf32> -> vector<16x128xf32>
    %c0_3 = arith.constant 0 : index
    %c0_4 = arith.constant 0 : index
    %3 = vector.load %arg3[%c0_3, %c0_4] : memref<1x128xf32, #tpu.memory_space<vmem>>, vector<1x128xf32>
    %4 = vector.broadcast %3 : vector<1x128xf32> to vector<16x128xf32>
    %5 = arith.addf %2, %4 : vector<16x128xf32>
    %c0_5 = arith.constant 0 : index
    %c0_6 = arith.constant 0 : index
    %6 = vector.load %arg4[%c0_5, %c0_6] : memref<16x128xf32, #tpu.memory_space<vmem>>, vector<16x128xf32>
    tpu.vector_store %arg4[%c0_5, %c0_6], %5 {strides = array<i32>} : memref<16x128xf32, #tpu.memory_space<vmem>>, vector<16x128xf32>,
    return
  }
  func.func @transform_0(%arg0: i32) -> (i32, i32) {
    %c0_i32 = arith.constant 0 : i32
    %c0_i32_0 = arith.constant 0 : i32
    return %arg0, %c0_i32 : i32, i32
  }
  func.func @transform_1(%arg0: i32) -> (i32, i32) {
    %c0_i32 = arith.constant 0 : i32
    %c0_i32_0 = arith.constant 0 : i32
    %c0_i32_1 = arith.constant 0 : i32
    return %c0_i32, %c0_i32_0 : i32, i32
  }
  func.func @transform_2(%arg0: i32) -> (i32, i32) {
    %c0_i32 = arith.constant 0 : i32
    %c0_i32_0 = arith.constant 0 : i32
    %c0_i32_1 = arith.constant 0 : i32
    return %c0_i32, %c0_i32_0 : i32, i32
  }
  func.func @transform_3(%arg0: i32) -> (i32, i32) {
    %c0_i32 = arith.constant 0 : i32
    %c0_i32_0 = arith.constant 0 : i32
    return %arg0, %c0_i32 : i32, i32
  }
}

</mosaic_0001>

<llo_original>
// kernel: dqn_forward.3
$region0: #{dqn_forward.3}
  #allocation0 [shape = 'u32[]', space=smem, size = 0x4, offset = 0x4, fixed_abs, tag = 'smem constant byte address 0x4 - core index']
  #allocation1 [shape = 'u32[144,128]{1,0:T(1,128)}', space=vmem, size = 0x12000, scoped, tag = 'internal scratch']
  %s0 = inlined_call_operand.vmem [shape: bf16[96,256], index: 0, kind: input, shape index: {}]
  %s1 = inlined_call_operand.vmem [shape: bf16[256,128], index: 1, kind: input, shape index: {}]
  %s2 = inlined_call_operand.vmem [shape: f32[1,128], index: 2, kind: input, shape index: {}]
  %s3 = inlined_call_operand.vmem [shape: bf16[96,128], index: 3, kind: output, shape index: {}]
  %s4 = sld [smem:[#allocation0]]
  $region45: #{dqn_forward.3} parent=0
    _
  %s6 = ssub.s32 1, %s4
  %s7 = scalar_select 0, %s6, %s4
  loop: start=0, step=1, limit=4
  $region2: #{dqn_forward.3} parent=0 // loop_pre_header
    _
  $region3: #{dqn_forward.3} parent=0 // loop_header
    %s9 = sphi 0, %s13
    %p10 = scmp.ge.s32.totalorder %s9, 4
    %s19 = sphi 0, %s21
    %s22 = sphi 0, %s19
    %s23 = sphi 0, %s22
    %s39 = sphi 0, %s23
    %s43 = sphi 0, %s43
    %s45 = sphi 0, %s43
    %s46 = sphi 0, %s45
    %s60 = sphi 0, %s46
    %s64 = sphi 0, %s64
    %s66 = sphi 0, %s64
    %s67 = sphi 0, %s66
    %s81 = sphi 0, %s67
    %s87 = sphi 0, %s89
    %s90 = sphi 0, %s87
    %s91 = sphi 0, %s90
    %s107 = sphi 0, %s91
  $region4: #{dqn_forward.3} parent=0 // loop_header_branch
    %12 = sbr.rel (%p10) target = $region8
  $region5: #{dqn_forward.3} parent=0 // loop_body
    %s14 = ssub.s32 %s9, 1
    %s15 = ssub.s32 %s9, 2
    %s16 = sadd.s32 %s9, 1
    %s17 = ssub.s32 %s9, %s16
    %p18 = scmp.eq.s32.totalorder %s17, 0
    %s20 = sadd.s32 %s19, 1
    %s21 = scalar_select %p18, %s19, %s20
    %p24 = pneg %p18
    %p25 = scmp.eq.s32.totalorder %s9, 1
    %p26 = por %p24, %p25
    %p27 = scmp.ne.s32.totalorder %s19, %s22
    %p28 = scmp.eq.s32.totalorder %s9, 0
    %p29 = por %p27, %p28
    %p30 = scmp.ne.s32.totalorder %s19, %s22
    %p31 = scmp.eq.s32.totalorder %s14, 1
    %p32 = por %p30, %p31
    %p33 = scmp.ne.s32.totalorder %s22, %s23
    %p34 = scmp.eq.s32.totalorder %s14, 0
    %p35 = por %p33, %p34
    %p36 = scmp.ne.s32.totalorder %s22, %s23
    %p37 = scmp.eq.s32.totalorder %s15, 1
    %p38 = por %p36, %p37
    %p40 = scmp.ne.s32.totalorder %s23, %s39
    %p41 = scmp.eq.s32.totalorder %s15, 0
    %p42 = por %p40, %p41
    %s44 = sadd.s32 %s43, 1
    %p47 = scmp.eq.s32.totalorder %s9, 1
    %p48 = scmp.ne.s32.totalorder %s43, %s45
    %p49 = scmp.eq.s32.totalorder %s9, 0
    %p50 = por %p48, %p49
    %p51 = scmp.ne.s32.totalorder %s43, %s45
    %p52 = scmp.eq.s32.totalorder %s14, 1
    %p53 = por %p51, %p52
    %p54 = scmp.ne.s32.totalorder %s45, %s46
    %p55 = scmp.eq.s32.totalorder %s14, 0
    %p56 = por %p54, %p55
    %p57 = scmp.ne.s32.totalorder %s45, %s46
    %p58 = scmp.eq.s32.totalorder %s15, 1
    %p59 = por %p57, %p58
    %p61 = scmp.ne.s32.totalorder %s46, %s60
    %p62 = scmp.eq.s32.totalorder %s15, 0
    %p63 = por %p61, %p62
    %s65 = sadd.s32 %s64, 1
    %p68 = scmp.eq.s32.totalorder %s9, 1
    %p69 = scmp.ne.s32.totalorder %s64, %s66
    %p70 = scmp.eq.s32.totalorder %s9, 0
    %p71 = por %p69, %p70
    %p72 = scmp.ne.s32.totalorder %s64, %s66
    %p73 = scmp.eq.s32.totalorder %s14, 1
    %p74 = por %p72, %p73
    %p75 = scmp.ne.s32.totalorder %s66, %s67
    %p76 = scmp.eq.s32.totalorder %s14, 0
    %p77 = por %p75, %p76
    %p78 = scmp.ne.s32.totalorder %s66, %s67
    %p79 = scmp.eq.s32.totalorder %s15, 1
    %p80 = por %p78, %p79
    %p82 = scmp.ne.s32.totalorder %s67, %s81
    %p83 = scmp.eq.s32.totalorder %s15, 0
    %p84 = por %p82, %p83
    %s85 = ssub.s32 %s9, %s16
    %p86 = scmp.eq.s32.totalorder %s85, 0
    %s88 = sadd.s32 %s87, 1
    %s89 = scalar_select %p86, %s87, %s88
    %p92 = pneg %p86
    %p93 = scmp.eq.s32.totalorder %s9, 1
    %p94 = por %p92, %p93
    %p95 = scmp.ne.s32.totalorder %s87, %s90
    %p96 = scmp.eq.s32.totalorder %s9, 0
    %p97 = por %p95, %p96
    %p98 = scmp.ne.s32.totalorder %s87, %s90
    %p99 = scmp.eq.s32.totalorder %s14, 1
    %p100 = por %p98, %p99
    %p101 = scmp.ne.s32.totalorder %s90, %s91
    %p102 = scmp.eq.s32.totalorder %s14, 0
    %p103 = por %p101, %p102
    %p104 = scmp.ne.s32.totalorder %s90, %s91
    %p105 = scmp.eq.s32.totalorder %s15, 1
    %p106 = por %p104, %p105
    %p108 = scmp.ne.s32.totalorder %s91, %s107
    %p109 = scmp.eq.s32.totalorder %s15, 0
    %p110 = por %p108, %p109
    %p111 = scmp.le.s32.totalorder 1, %s9
    %p112 = scmp.lt.s32.totalorder %s9, 3
    %p113 = pnand %p111, %p112
    %p114 = pneg %p113
    // Predicated region
    $region9: #{dqn_forward.3} parent=5 // pred_check
      _
    $region10: #{dqn_forward.3} parent=5 // pred_check_branch
      %116 = sbr.rel (%p113) target = $region12
    $region11: #{dqn_forward.3} parent=5 // pred_region
      %s117 = ssub.s32 %s9, 1
      // Predicated region
      $region13: #{dqn_forward.3} parent=11 // pred_check
        %p118 = pneg %p56
      $region14: #{dqn_forward.3} parent=11 // pred_check_branch
        %120 = sbr.rel (%p118) target = $region16
      $region15: #{dqn_forward.3} parent=11 // pred_region
        _
      $region16: #{dqn_forward.3} parent=11 // pred_fallthru
        _
      // Predicated region
      $region17: #{dqn_forward.3} parent=11 // pred_check
        %p121 = pneg %p77
      $region18: #{dqn_forward.3} parent=11 // pred_check_branch
        %123 = sbr.rel (%p121) target = $region20
      $region19: #{dqn_forward.3} parent=11 // pred_region
        _
      $region20: #{dqn_forward.3} parent=11 // pred_fallthru
        _
    $region12: #{dqn_forward.3} parent=5 // pred_fallthru
      _
    %p124 = scmp.lt.s32.totalorder %s9, 2
    // Predicated region
    $region21: #{dqn_forward.3} parent=5 // pred_check
      %p125 = pneg %p124
    $region22: #{dqn_forward.3} parent=5 // pred_check_branch
      %127 = sbr.rel (%p125) target = $region24
    $region23: #{dqn_forward.3} parent=5 // pred_region
      // Predicated region
      $region25: #{dqn_forward.3} parent=23 // pred_check
        %p128 = pneg %p29
      $region26: #{dqn_forward.3} parent=23 // pred_check_branch
        %130 = sbr.rel (%p128) target = $region28
      $region27: #{dqn_forward.3} parent=23 // pred_region
        %s131 = smul.u32 6, %s9
        %p132 = scmp.lt.s32.totalorder %s131, 11
        %s133 = scalar_select %p132, %s131, 11
        %s134 = smul.addr %s133, 2
        %s135 = smul.addr %s134, 4
        %s136 = scalar_lea.vmem %s0, %s135
        %s137 = smul.u32 6, %s9
      $region28: #{dqn_forward.3} parent=23 // pred_fallthru
        _
    $region24: #{dqn_forward.3} parent=5 // pred_fallthru
      _
    %p138 = scmp.le.s32.totalorder 1, %s9
    %p139 = scmp.lt.s32.totalorder %s9, 3
    %p140 = pnand %p138, %p139
    %p141 = pneg %p140
    // Predicated region
    $region29: #{dqn_forward.3} parent=5 // pred_check
      _
    $region30: #{dqn_forward.3} parent=5 // pred_check_branch
      %143 = sbr.rel (%p140) target = $region32
    $region31: #{dqn_forward.3} parent=5 // pred_region
      %s144 = ssub.s32 %s9, 1
      %s145 = smul.u32 6, %s14
      %p146 = scmp.lt.s32.totalorder %s145, 11
      %s147 = scalar_select %p146, %s145, 11
      %s148 = smul.addr %s147, 2
      %s149 = smul.addr %s148, 4
      %s150 = scalar_lea.vmem %s0, %s149
      %p151 = pneg %p35
      %p152 = pneg %p32
      %p153 = pneg %p56
      %p154 = pneg %p53
      %p155 = pneg %p77
      %p156 = pneg %p74
      %p157 = pneg %p103
      %p158 = pneg %p100
      %s159 = smul.u32 6, %s14
      %p160 = scmp.lt.s32.totalorder %s159, 11
      %s161 = scalar_select %p160, %s159, 11
      %s162 = smul.addr %s161, 4
      %s163 = scalar_lea.vmem %s3, %s162
      %s164 = smul.u32 6, %s14
      %p165 = scmp.lt.s32.totalorder %s164, 11
      %s166 = scalar_select %p165, %s164, 11
      %s167 = smul.addr %s166, 2
      %s168 = smul.addr %s167, 4
      %s169 = scalar_lea.vmem %s0, %s168
      %s170 = smul.u32 6, %s14
      %s171 = smul.u32 6, %s14
      %p172 = scmp.lt.s32.totalorder %s171, 11
      %s173 = scalar_select %p172, %s171, 11
      %s174 = smul.addr %s173, 4
      %s175 = scalar_lea.vmem %s3, %s174
      %s176 = smul.u32 6, %s14
      %v178 = vld [vmem:[%s169] sm:$0xff]
      %v179 = vld [vmem:[%s169 + $0x8] sm:$0xff]
      %v180 = vld [vmem:[%s169 + $0x10] sm:$0xff]
      %v181 = vld [vmem:[%s169 + $0x18] sm:$0xff]
      %v182 = vld [vmem:[%s169 + $0x20] sm:$0xff]
      %v183 = vld [vmem:[%s169 + $0x28] sm:$0xff]
      %v184 = vld [vmem:[%s1] sm:$0xf]
      %v185 = vld [vmem:[%s1 + $0x4] sm:$0xf]
      %v186 = vld [vmem:[%s1 + $0x8] sm:$0xf]
      %v187 = vld [vmem:[%s1 + $0xc] sm:$0xf]
      %v188 = vld [vmem:[%s1 + $0x10] sm:$0xf]
      %v189 = vld [vmem:[%s1 + $0x14] sm:$0xf]
      %v190 = vld [vmem:[%s1 + $0x18] sm:$0xf]
      %v191 = vld [vmem:[%s1 + $0x1c] sm:$0xf]
      %v192 = vld [vmem:[%s1 + $0x20] sm:$0xf]
      %v193 = vld [vmem:[%s1 + $0x24] sm:$0xf]
      %v194 = vld [vmem:[%s1 + $0x28] sm:$0xf]
      %v195 = vld [vmem:[%s1 + $0x2c] sm:$0xf]
      %v196 = vld [vmem:[%s1 + $0x30] sm:$0xf]
      %v197 = vld [vmem:[%s1 + $0x34] sm:$0xf]
      %v198 = vld [vmem:[%s1 + $0x38] sm:$0xf]
      %v199 = vld [vmem:[%s1 + $0x3c] sm:$0xf]
      %v200 = vld [vmem:[%s1 + $0x40] sm:$0xf]
      %v201 = vld [vmem:[%s1 + $0x44] sm:$0xf]
      %v202 = vld [vmem:[%s1 + $0x48] sm:$0xf]
      %v203 = vld [vmem:[%s1 + $0x4c] sm:$0xf]
      %v204 = vld [vmem:[%s1 + $0x50] sm:$0xf]
      %v205 = vld [vmem:[%s1 + $0x54] sm:$0xf]
      %v206 = vld [vmem:[%s1 + $0x58] sm:$0xf]
      %v207 = vld [vmem:[%s1 + $0x5c] sm:$0xf]
      %v208 = vld [vmem:[%s1 + $0x60] sm:$0xf]
      %v209 = vld [vmem:[%s1 + $0x64] sm:$0xf]
      %v210 = vld [vmem:[%s1 + $0x68] sm:$0xf]
      %v211 = vld [vmem:[%s1 + $0x6c] sm:$0xf]
      %v212 = vld [vmem:[%s1 + $0x70] sm:$0xf]
      %v213 = vld [vmem:[%s1 + $0x74] sm:$0xf]
      %v214 = vld [vmem:[%s1 + $0x78] sm:$0xf]
      %v215 = vld [vmem:[%s1 + $0x7c] sm:$0xf]
      %v216 = vld [vmem:[%s2] sm:$0x1]
      %v218 = vlaneseq
      %v219 = vshrl.u32 %v218, 7
      %v220 = vsub.s32 0, %v219
      %v221 = vrot.slane %v216, %v220
      %v229 = vunpack.c.l.b16 %v178
      %v230 = vunpack.c.h.b16 %v178
      %v231 = vunpack.c.l.b16 %v179
      %v232 = vunpack.c.h.b16 %v179
      %v233 = vunpack.c.l.b16 %v180
      %v234 = vunpack.c.h.b16 %v180
      %v235 = vunpack.c.l.b16 %v181
      %v236 = vunpack.c.h.b16 %v181
      %v237 = vunpack.c.l.b16 %v182
      %v238 = vunpack.c.h.b16 %v182
      %v239 = vunpack.c.l.b16 %v183
      %v240 = vunpack.c.h.b16 %v183
      %v241 = vpack.c.b16 %v231, %v229
      %v242 = vpack.c.b16 %v232, %v230
      %v243 = vpack.c.b16 %v235, %v233
      %v244 = vpack.c.b16 %v236, %v234
      %v245 = vpack.c.b16 %v239, %v237
      %v246 = vpack.c.b16 %v240, %v238
      %v285 = vunpack.c.l.b16 %v184
      %v286 = vunpack.c.l.b16 %v185
      %v287 = vunpack.c.l.b16 %v186
      %v288 = vunpack.c.l.b16 %v187
      %v289 = vunpack.c.l.b16 %v188
      %v290 = vunpack.c.l.b16 %v189
      %v291 = vunpack.c.l.b16 %v190
      %v292 = vunpack.c.l.b16 %v191
      %v293 = vunpack.c.l.b16 %v192
      %v294 = vunpack.c.l.b16 %v193
      %v295 = vunpack.c.l.b16 %v194
      %v296 = vunpack.c.l.b16 %v195
      %v297 = vunpack.c.l.b16 %v196
      %v298 = vunpack.c.l.b16 %v197
      %v299 = vunpack.c.l.b16 %v198
      %v300 = vunpack.c.l.b16 %v199
      %v301 = vunpack.c.l.b16 %v200
      %v302 = vunpack.c.l.b16 %v201
      %v303 = vunpack.c.l.b16 %v202
      %v304 = vunpack.c.l.b16 %v203
      %v305 = vunpack.c.l.b16 %v204
      %v306 = vunpack.c.l.b16 %v205
      %v307 = vunpack.c.l.b16 %v206
      %v308 = vunpack.c.l.b16 %v207
      %v309 = vunpack.c.l.b16 %v208
      %v310 = vunpack.c.l.b16 %v209
      %v311 = vunpack.c.l.b16 %v210
      %v312 = vunpack.c.l.b16 %v211
      %v313 = vunpack.c.l.b16 %v212
      %v314 = vunpack.c.l.b16 %v213
      %v315 = vunpack.c.l.b16 %v214
      %v316 = vunpack.c.l.b16 %v215
      %v317 = vpack.c.b16 %v286, %v285
      %v318 = vpack.c.b16 %v288, %v287
      %v319 = vpack.c.b16 %v290, %v289
      %v320 = vpack.c.b16 %v292, %v291
      %v321 = vpack.c.b16 %v294, %v293
      %v322 = vpack.c.b16 %v296, %v295
      %v323 = vpack.c.b16 %v298, %v297
      %v324 = vpack.c.b16 %v300, %v299
      %v325 = vpack.c.b16 %v302, %v301
      %v326 = vpack.c.b16 %v304, %v303
      %v327 = vpack.c.b16 %v306, %v305
      %v328 = vpack.c.b16 %v308, %v307
      %v329 = vpack.c.b16 %v310, %v309
      %v330 = vpack.c.b16 %v312, %v311
      %v331 = vpack.c.b16 %v314, %v313
      %v332 = vpack.c.b16 %v316, %v315
      %349 = vmatprep.subr.bf16.mxu0 0
      %350 = vmatpush1.bf16.msra.mxu0 %v317
      %351 = vmatprep.subr.bf16.mxu0 0
      %352 = vmatpush1.bf16.msra.mxu0 %v318
      %353 = vmatprep.subr.bf16.mxu0 0
      %354 = vmatpush1.bf16.msra.mxu0 %v319
      %355 = vmatprep.subr.bf16.mxu0 0
      %356 = vmatpush1.bf16.msra.mxu0 %v320
      %357 = vmatprep.subr.bf16.mxu0 0
      %358 = vmatpush1.bf16.msra.mxu0 %v321
      %359 = vmatprep.subr.bf16.mxu0 0
      %360 = vmatpush1.bf16.msra.mxu0 %v322
      %361 = vmatprep.subr.bf16.mxu0 0
      %362 = vmatpush1.bf16.msra.mxu0 %v323
      %363 = vmatprep.subr.bf16.mxu0 0
      %364 = vmatpush1.bf16.msra.mxu0 %v324
      %365 = vmatprep.subr.bf16.mxu0 0
      %366 = vmatpush1.bf16.msra.mxu0 %v325
      %367 = vmatprep.subr.bf16.mxu0 0
      %368 = vmatpush1.bf16.msra.mxu0 %v326
      %369 = vmatprep.subr.bf16.mxu0 0
      %370 = vmatpush1.bf16.msra.mxu0 %v327
      %371 = vmatprep.subr.bf16.mxu0 0
      %372 = vmatpush1.bf16.msra.mxu0 %v328
      %373 = vmatprep.subr.bf16.mxu0 0
      %374 = vmatpush1.bf16.msra.mxu0 %v329
      %375 = vmatprep.subr.bf16.mxu0 0
      %376 = vmatpush1.bf16.msra.mxu0 %v330
      %377 = vmatprep.subr.bf16.mxu0 0
      %378 = vmatpush1.bf16.msra.mxu0 %v331
      %379 = vmatprep.subr.bf16.mxu0 0
      %380 = vmatpush1.bf16.msra.mxu0 %v332
      %381 = vmatprep.mubr.bf16.mxu0 %v242
      %382 = vmatmul.mubr.bf16.gmra.mrb[0].mxu0 %v241
      %v383 = vpop.f32.mrb[0].mxu0
      %v384 = vadd.f32 %v221, %v383
      %v385 = vpop.f32.mrb[0].mxu0
      %v386 = vpop.f32.mrb[0].mxu0
      %v387 = vadd.f32 %v221, %v386
      %v388 = vpop.f32.mrb[0].mxu0
      %389 = vmatprep.mubr.bf16.mxu0 %v244
      %390 = vmatmul.mubr.bf16.gmra.mrb[0].mxu0 %v243
      %v391 = vpop.f32.mrb[0].mxu0
      %v392 = vadd.f32 %v221, %v391
      %v393 = vpop.f32.mrb[0].mxu0
      %v394 = vpop.f32.mrb[0].mxu0
      %v395 = vadd.f32 %v221, %v394
      %v396 = vpop.f32.mrb[0].mxu0
      %397 = vmatprep.mubr.bf16.mxu0 %v246
      %398 = vmatmul.mubr.bf16.gmra.mrb[0].mxu0 %v245
      %v399 = vpop.f32.mrb[0].mxu0
      %v400 = vadd.f32 %v221, %v399
      %v401 = vpop.f32.mrb[0].mxu0
      %v402 = vpop.f32.mrb[0].mxu0
      %v403 = vadd.f32 %v221, %v402
      %v404 = vpop.f32.mrb[0].mxu0
      %405 = vdwg.mxu0
      %v406 = vmax.f32 %v384, 0.0
      %v407 = vmax.f32 %v387, 0.0
      %v408 = vmax.f32 %v392, 0.0
      %v409 = vmax.f32 %v395, 0.0
      %v410 = vmax.f32 %v400, 0.0
      %v411 = vmax.f32 %v403, 0.0
      %v412 = vpack.c.bf16 %v407, %v406
      %v413 = vpack.c.bf16 %v409, %v408
      %v414 = vpack.c.bf16 %v411, %v410
      %v418 = vunpack.c.l.b16 %v412
      %v419 = vunpack.c.h.b16 %v412
      %v420 = vunpack.c.l.b16 %v413
      %v421 = vunpack.c.h.b16 %v413
      %v422 = vunpack.c.l.b16 %v414
      %v423 = vunpack.c.h.b16 %v414
      %v424 = vpack.c.b16 %v418, %v418
      %v425 = vpack.c.b16 %v419, %v419
      %v426 = vpack.c.b16 %v420, %v420
      %v427 = vpack.c.b16 %v421, %v421
      %v428 = vpack.c.b16 %v422, %v422
      %v429 = vpack.c.b16 %v423, %v423
      %436 = vst [vmem:[%s175] sm:$0xf] %v424
      %437 = vst [vmem:[%s175 + $0x4] sm:$0xf] %v425
      %438 = vst [vmem:[%s175 + $0x8] sm:$0xf] %v426
      %439 = vst [vmem:[%s175 + $0xc] sm:$0xf] %v427
      %440 = vst [vmem:[%s175 + $0x10] sm:$0xf] %v428
      %441 = vst [vmem:[%s175 + $0x14] sm:$0xf] %v429
      %s442 = smul.u32 6, %s14
      %p443 = scmp.lt.s32.totalorder %s442, 11
      %s444 = scalar_select %p443, %s442, 11
      %s445 = smul.addr %s444, 4
      %s446 = scalar_lea.vmem %s3, %s445
      // Predicated region
      $region33: #{dqn_forward.3} parent=31 // pred_check
        %p447 = pneg %p100
      $region34: #{dqn_forward.3} parent=31 // pred_check_branch
        %449 = sbr.rel (%p447) target = $region36
      $region35: #{dqn_forward.3} parent=31 // pred_region
        %s450 = smul.u32 6, %s14
      $region36: #{dqn_forward.3} parent=31 // pred_fallthru
        _
    $region32: #{dqn_forward.3} parent=5 // pred_fallthru
      _
    %p451 = scmp.le.s32.totalorder 2, %s9
    // Predicated region
    $region37: #{dqn_forward.3} parent=5 // pred_check
      %p452 = pneg %p451
    $region38: #{dqn_forward.3} parent=5 // pred_check_branch
      %454 = sbr.rel (%p452) target = $region40
    $region39: #{dqn_forward.3} parent=5 // pred_region
      %s455 = ssub.s32 %s9, 2
      // Predicated region
      $region41: #{dqn_forward.3} parent=39 // pred_check
        %p456 = pneg %p106
      $region42: #{dqn_forward.3} parent=39 // pred_check_branch
        %458 = sbr.rel (%p456) target = $region44
      $region43: #{dqn_forward.3} parent=39 // pred_region
        %s459 = smul.u32 6, %s15
        %p460 = scmp.lt.s32.totalorder %s459, 11
        %s461 = scalar_select %p460, %s459, 11
        %s462 = smul.addr %s461, 4
        %s463 = scalar_lea.vmem %s3, %s462
      $region44: #{dqn_forward.3} parent=39 // pred_fallthru
        _
    $region40: #{dqn_forward.3} parent=5 // pred_fallthru
      _
  $region6: #{dqn_forward.3} parent=0 // loop_footer
    %s13 = sadd.s32 1, %s9
  $region7: #{dqn_forward.3} parent=0 // loop_footer_branch
    %8 = sbr.rel target = $region3
  $region8: #{dqn_forward.3} parent=0 // loop_exit
    _

// kernel: dqn_forward.4
$region0: #{dqn_forward.4}
  #allocation0 [shape = 'u32[]', space=smem, size = 0x4, offset = 0x4, fixed_abs, tag = 'smem constant byte address 0x4 - core index']
  #allocation1 [shape = 'u32[144,128]{1,0:T(1,128)}', space=vmem, size = 0x12000, scoped, tag = 'internal scratch']
  %s0 = inlined_call_operand.vmem [shape: bf16[16,512], index: 0, kind: input, shape index: {}]
  %s1 = inlined_call_operand.vmem [shape: bf16[512,128], index: 1, kind: input, shape index: {}]
  %s2 = inlined_call_operand.vmem [shape: f32[1,128], index: 2, kind: input, shape index: {}]
  %s3 = inlined_call_operand.vmem [shape: bf16[16,128], index: 3, kind: output, shape index: {}]
  %s4 = sld [smem:[#allocation0]]
  $region22: #{dqn_forward.4} parent=0
    _
  %s6 = ssub.s32 1, %s4
  %s7 = scalar_select 0, %s6, %s4
  // Predicated region
  $region2: #{dqn_forward.4} parent=0 // pred_check
    _
  $region3: #{dqn_forward.4} parent=0 // pred_check_branch
    %9 = sbr.rel (0) target = $region5
  $region4: #{dqn_forward.4} parent=0 // pred_region
    _
  $region5: #{dqn_forward.4} parent=0 // pred_fallthru
    _
  // Predicated region
  $region6: #{dqn_forward.4} parent=0 // pred_check
    _
  $region7: #{dqn_forward.4} parent=0 // pred_check_branch
    %11 = sbr.rel (0) target = $region9
  $region8: #{dqn_forward.4} parent=0 // pred_region
    _
  $region9: #{dqn_forward.4} parent=0 // pred_fallthru
    _
  // Predicated region
  $region10: #{dqn_forward.4} parent=0 // pred_check
    _
  $region11: #{dqn_forward.4} parent=0 // pred_check_branch
    %13 = sbr.rel (0) target = $region13
  $region12: #{dqn_forward.4} parent=0 // pred_region
    _
  $region13: #{dqn_forward.4} parent=0 // pred_fallthru
    _
  %v15 = vld [vmem:[%s0] sm:$0xff]
  %v16 = vld [vmem:[%s0 + $0x8] sm:$0xff]
  %v17 = vld [vmem:[%s0 + $0x10] sm:$0xff]
  %v18 = vld [vmem:[%s0 + $0x18] sm:$0xff]
  %v19 = vld [vmem:[%s1] sm:$0xf]
  %v20 = vld [vmem:[%s1 + $0x4] sm:$0xf]
  %v21 = vld [vmem:[%s1 + $0x8] sm:$0xf]
  %v22 = vld [vmem:[%s1 + $0xc] sm:$0xf]
  %v23 = vld [vmem:[%s1 + $0x10] sm:$0xf]
  %v24 = vld [vmem:[%s1 + $0x14] sm:$0xf]
  %v25 = vld [vmem:[%s1 + $0x18] sm:$0xf]
  %v26 = vld [vmem:[%s1 + $0x1c] sm:$0xf]
  %v27 = vld [vmem:[%s1 + $0x20] sm:$0xf]
  %v28 = vld [vmem:[%s1 + $0x24] sm:$0xf]
  %v29 = vld [vmem:[%s1 + $0x28] sm:$0xf]
  %v30 = vld [vmem:[%s1 + $0x2c] sm:$0xf]
  %v31 = vld [vmem:[%s1 + $0x30] sm:$0xf]
  %v32 = vld [vmem:[%s1 + $0x34] sm:$0xf]
  %v33 = vld [vmem:[%s1 + $0x38] sm:$0xf]
  %v34 = vld [vmem:[%s1 + $0x3c] sm:$0xf]
  %v35 = vld [vmem:[%s1 + $0x40] sm:$0xf]
  %v36 = vld [vmem:[%s1 + $0x44] sm:$0xf]
  %v37 = vld [vmem:[%s1 + $0x48] sm:$0xf]
  %v38 = vld [vmem:[%s1 + $0x4c] sm:$0xf]
  %v39 = vld [vmem:[%s1 + $0x50] sm:$0xf]
  %v40 = vld [vmem:[%s1 + $0x54] sm:$0xf]
  %v41 = vld [vmem:[%s1 + $0x58] sm:$0xf]
  %v42 = vld [vmem:[%s1 + $0x5c] sm:$0xf]
  %v43 = vld [vmem:[%s1 + $0x60] sm:$0xf]
  %v44 = vld [vmem:[%s1 + $0x64] sm:$0xf]
  %v45 = vld [vmem:[%s1 + $0x68] sm:$0xf]
  %v46 = vld [vmem:[%s1 + $0x6c] sm:$0xf]
  %v47 = vld [vmem:[%s1 + $0x70] sm:$0xf]
  %v48 = vld [vmem:[%s1 + $0x74] sm:$0xf]
  %v49 = vld [vmem:[%s1 + $0x78] sm:$0xf]
  %v50 = vld [vmem:[%s1 + $0x7c] sm:$0xf]
  %v51 = vld [vmem:[%s1 + $0x80] sm:$0xf]
  %v52 = vld [vmem:[%s1 + $0x84] sm:$0xf]
  %v53 = vld [vmem:[%s1 + $0x88] sm:$0xf]
  %v54 = vld [vmem:[%s1 + $0x8c] sm:$0xf]
  %v55 = vld [vmem:[%s1 + $0x90] sm:$0xf]
  %v56 = vld [vmem:[%s1 + $0x94] sm:$0xf]
  %v57 = vld [vmem:[%s1 + $0x98] sm:$0xf]
  %v58 = vld [vmem:[%s1 + $0x9c] sm:$0xf]
  %v59 = vld [vmem:[%s1 + $0xa0] sm:$0xf]
  %v60 = vld [vmem:[%s1 + $0xa4] sm:$0xf]
  %v61 = vld [vmem:[%s1 + $0xa8] sm:$0xf]
  %v62 = vld [vmem:[%s1 + $0xac] sm:$0xf]
  %v63 = vld [vmem:[%s1 + $0xb0] sm:$0xf]
  %v64 = vld [vmem:[%s1 + $0xb4] sm:$0xf]
  %v65 = vld [vmem:[%s1 + $0xb8] sm:$0xf]
  %v66 = vld [vmem:[%s1 + $0xbc] sm:$0xf]
  %v67 = vld [vmem:[%s1 + $0xc0] sm:$0xf]
  %v68 = vld [vmem:[%s1 + $0xc4] sm:$0xf]
  %v69 = vld [vmem:[%s1 + $0xc8] sm:$0xf]
  %v70 = vld [vmem:[%s1 + $0xcc] sm:$0xf]
  %v71 = vld [vmem:[%s1 + $0xd0] sm:$0xf]
  %v72 = vld [vmem:[%s1 + $0xd4] sm:$0xf]
  %v73 = vld [vmem:[%s1 + $0xd8] sm:$0xf]
  %v74 = vld [vmem:[%s1 + $0xdc] sm:$0xf]
  %v75 = vld [vmem:[%s1 + $0xe0] sm:$0xf]
  %v76 = vld [vmem:[%s1 + $0xe4] sm:$0xf]
  %v77 = vld [vmem:[%s1 + $0xe8] sm:$0xf]
  %v78 = vld [vmem:[%s1 + $0xec] sm:$0xf]
  %v79 = vld [vmem:[%s1 + $0xf0] sm:$0xf]
  %v80 = vld [vmem:[%s1 + $0xf4] sm:$0xf]
  %v81 = vld [vmem:[%s1 + $0xf8] sm:$0xf]
  %v82 = vld [vmem:[%s1 + $0xfc] sm:$0xf]
  %v83 = vld [vmem:[%s2] sm:$0x1]
  %v85 = vlaneseq
  %v86 = vshrl.u32 %v85, 7
  %v87 = vsub.s32 0, %v86
  %v88 = vrot.slane %v83, %v87
  %v94 = vunpack.c.l.b16 %v15
  %v95 = vunpack.c.h.b16 %v15
  %v96 = vunpack.c.l.b16 %v16
  %v97 = vunpack.c.h.b16 %v16
  %v98 = vunpack.c.l.b16 %v17
  %v99 = vunpack.c.h.b16 %v17
  %v100 = vunpack.c.l.b16 %v18
  %v101 = vunpack.c.h.b16 %v18
  %v102 = vpack.c.b16 %v98, %v94
  %v103 = vpack.c.b16 %v99, %v95
  %v104 = vpack.c.b16 %v100, %v96
  %v105 = vpack.c.b16 %v101, %v97
  %v174 = vunpack.c.l.b16 %v19
  %v175 = vunpack.c.l.b16 %v20
  %v176 = vunpack.c.l.b16 %v21
  %v177 = vunpack.c.l.b16 %v22
  %v178 = vunpack.c.l.b16 %v23
  %v179 = vunpack.c.l.b16 %v24
  %v180 = vunpack.c.l.b16 %v25
  %v181 = vunpack.c.l.b16 %v26
  %v182 = vunpack.c.l.b16 %v27
  %v183 = vunpack.c.l.b16 %v28
  %v184 = vunpack.c.l.b16 %v29
  %v185 = vunpack.c.l.b16 %v30
  %v186 = vunpack.c.l.b16 %v31
  %v187 = vunpack.c.l.b16 %v32
  %v188 = vunpack.c.l.b16 %v33
  %v189 = vunpack.c.l.b16 %v34
  %v190 = vunpack.c.l.b16 %v35
  %v191 = vunpack.c.l.b16 %v36
  %v192 = vunpack.c.l.b16 %v37
  %v193 = vunpack.c.l.b16 %v38
  %v194 = vunpack.c.l.b16 %v39
  %v195 = vunpack.c.l.b16 %v40
  %v196 = vunpack.c.l.b16 %v41
  %v197 = vunpack.c.l.b16 %v42
  %v198 = vunpack.c.l.b16 %v43
  %v199 = vunpack.c.l.b16 %v44
  %v200 = vunpack.c.l.b16 %v45
  %v201 = vunpack.c.l.b16 %v46
  %v202 = vunpack.c.l.b16 %v47
  %v203 = vunpack.c.l.b16 %v48
  %v204 = vunpack.c.l.b16 %v49
  %v205 = vunpack.c.l.b16 %v50
  %v206 = vunpack.c.l.b16 %v51
  %v207 = vunpack.c.l.b16 %v52
  %v208 = vunpack.c.l.b16 %v53
  %v209 = vunpack.c.l.b16 %v54
  %v210 = vunpack.c.l.b16 %v55
  %v211 = vunpack.c.l.b16 %v56
  %v212 = vunpack.c.l.b16 %v57
  %v213 = vunpack.c.l.b16 %v58
  %v214 = vunpack.c.l.b16 %v59
  %v215 = vunpack.c.l.b16 %v60
  %v216 = vunpack.c.l.b16 %v61
  %v217 = vunpack.c.l.b16 %v62
  %v218 = vunpack.c.l.b16 %v63
  %v219 = vunpack.c.l.b16 %v64
  %v220 = vunpack.c.l.b16 %v65
  %v221 = vunpack.c.l.b16 %v66
  %v222 = vunpack.c.l.b16 %v67
  %v223 = vunpack.c.l.b16 %v68
  %v224 = vunpack.c.l.b16 %v69
  %v225 = vunpack.c.l.b16 %v70
  %v226 = vunpack.c.l.b16 %v71
  %v227 = vunpack.c.l.b16 %v72
  %v228 = vunpack.c.l.b16 %v73
  %v229 = vunpack.c.l.b16 %v74
  %v230 = vunpack.c.l.b16 %v75
  %v231 = vunpack.c.l.b16 %v76
  %v232 = vunpack.c.l.b16 %v77
  %v233 = vunpack.c.l.b16 %v78
  %v234 = vunpack.c.l.b16 %v79
  %v235 = vunpack.c.l.b16 %v80
  %v236 = vunpack.c.l.b16 %v81
  %v237 = vunpack.c.l.b16 %v82
  %v238 = vpack.c.b16 %v175, %v174
  %v239 = vpack.c.b16 %v177, %v176
  %v240 = vpack.c.b16 %v179, %v178
  %v241 = vpack.c.b16 %v181, %v180
  %v242 = vpack.c.b16 %v183, %v182
  %v243 = vpack.c.b16 %v185, %v184
  %v244 = vpack.c.b16 %v187, %v186
  %v245 = vpack.c.b16 %v189, %v188
  %v246 = vpack.c.b16 %v191, %v190
  %v247 = vpack.c.b16 %v193, %v192
  %v248 = vpack.c.b16 %v195, %v194
  %v249 = vpack.c.b16 %v197, %v196
  %v250 = vpack.c.b16 %v199, %v198
  %v251 = vpack.c.b16 %v201, %v200
  %v252 = vpack.c.b16 %v203, %v202
  %v253 = vpack.c.b16 %v205, %v204
  %v254 = vpack.c.b16 %v207, %v206
  %v255 = vpack.c.b16 %v209, %v208
  %v256 = vpack.c.b16 %v211, %v210
  %v257 = vpack.c.b16 %v213, %v212
  %v258 = vpack.c.b16 %v215, %v214
  %v259 = vpack.c.b16 %v217, %v216
  %v260 = vpack.c.b16 %v219, %v218
  %v261 = vpack.c.b16 %v221, %v220
  %v262 = vpack.c.b16 %v223, %v222
  %v263 = vpack.c.b16 %v225, %v224
  %v264 = vpack.c.b16 %v227, %v226
  %v265 = vpack.c.b16 %v229, %v228
  %v266 = vpack.c.b16 %v231, %v230
  %v267 = vpack.c.b16 %v233, %v232
  %v268 = vpack.c.b16 %v235, %v234
  %v269 = vpack.c.b16 %v237, %v236
  %302 = vmatprep.subr.bf16.mxu0 0
  %303 = vmatpush1.bf16.msra.mxu0 %v238
  %304 = vmatprep.subr.bf16.mxu0 0
  %305 = vmatpush1.bf16.msra.mxu0 %v239
  %306 = vmatprep.subr.bf16.mxu0 0
  %307 = vmatpush1.bf16.msra.mxu0 %v240
  %308 = vmatprep.subr.bf16.mxu0 0
  %309 = vmatpush1.bf16.msra.mxu0 %v241
  %310 = vmatprep.subr.bf16.mxu0 0
  %311 = vmatpush1.bf16.msra.mxu0 %v242
  %312 = vmatprep.subr.bf16.mxu0 0
  %313 = vmatpush1.bf16.msra.mxu0 %v243
  %314 = vmatprep.subr.bf16.mxu0 0
  %315 = vmatpush1.bf16.msra.mxu0 %v244
  %316 = vmatprep.subr.bf16.mxu0 0
  %317 = vmatpush1.bf16.msra.mxu0 %v245
  %318 = vmatprep.subr.bf16.mxu0 0
  %319 = vmatpush1.bf16.msra.mxu0 %v246
  %320 = vmatprep.subr.bf16.mxu0 0
  %321 = vmatpush1.bf16.msra.mxu0 %v247
  %322 = vmatprep.subr.bf16.mxu0 0
  %323 = vmatpush1.bf16.msra.mxu0 %v248
  %324 = vmatprep.subr.bf16.mxu0 0
  %325 = vmatpush1.bf16.msra.mxu0 %v249
  %326 = vmatprep.subr.bf16.mxu0 0
  %327 = vmatpush1.bf16.msra.mxu0 %v250
  %328 = vmatprep.subr.bf16.mxu0 0
  %329 = vmatpush1.bf16.msra.mxu0 %v251
  %330 = vmatprep.subr.bf16.mxu0 0
  %331 = vmatpush1.bf16.msra.mxu0 %v252
  %332 = vmatprep.subr.bf16.mxu0 0
  %333 = vmatpush1.bf16.msra.mxu0 %v253
  %334 = vmatprep.mubr.bf16.mxu0 %v103
  %335 = vmatmul.mubr.bf16.gmra.mrb[0].mxu0 %v102
  %v336 = vpop.f32.mrb[0].mxu0
  %v337 = vadd.f32 %v88, %v336
  %v338 = vpop.f32.mrb[0].mxu0
  %v339 = vpop.f32.mrb[0].mxu0
  %v340 = vadd.f32 %v88, %v339
  %v341 = vpop.f32.mrb[0].mxu0
  %342 = vdwg.mxu0
  %343 = vmatprep.subr.bf16.mxu0 0
  %344 = vmatpush1.bf16.msra.mxu0 %v254
  %345 = vmatprep.subr.bf16.mxu0 0
  %346 = vmatpush1.bf16.msra.mxu0 %v255
  %347 = vmatprep.subr.bf16.mxu0 0
  %348 = vmatpush1.bf16.msra.mxu0 %v256
  %349 = vmatprep.subr.bf16.mxu0 0
  %350 = vmatpush1.bf16.msra.mxu0 %v257
  %351 = vmatprep.subr.bf16.mxu0 0
  %352 = vmatpush1.bf16.msra.mxu0 %v258
  %353 = vmatprep.subr.bf16.mxu0 0
  %354 = vmatpush1.bf16.msra.mxu0 %v259
  %355 = vmatprep.subr.bf16.mxu0 0
  %356 = vmatpush1.bf16.msra.mxu0 %v260
  %357 = vmatprep.subr.bf16.mxu0 0
  %358 = vmatpush1.bf16.msra.mxu0 %v261
  %359 = vmatprep.subr.bf16.mxu0 0
  %360 = vmatpush1.bf16.msra.mxu0 %v262
  %361 = vmatprep.subr.bf16.mxu0 0
  %362 = vmatpush1.bf16.msra.mxu0 %v263
  %363 = vmatprep.subr.bf16.mxu0 0
  %364 = vmatpush1.bf16.msra.mxu0 %v264
  %365 = vmatprep.subr.bf16.mxu0 0
  %366 = vmatpush1.bf16.msra.mxu0 %v265
  %367 = vmatprep.subr.bf16.mxu0 0
  %368 = vmatpush1.bf16.msra.mxu0 %v266
  %369 = vmatprep.subr.bf16.mxu0 0
  %370 = vmatpush1.bf16.msra.mxu0 %v267
  %371 = vmatprep.subr.bf16.mxu0 0
  %372 = vmatpush1.bf16.msra.mxu0 %v268
  %373 = vmatprep.subr.bf16.mxu0 0
  %374 = vmatpush1.bf16.msra.mxu0 %v269
  %375 = vmatprep.mubr.bf16.mxu0 %v105
  %376 = vmatmul.mubr.bf16.gmra.mrb[0].mxu0 %v104
  %v377 = vpop.f32.mrb[0].mxu0
  %v378 = vadd.f32 %v337, %v377
  %v379 = vpop.f32.mrb[0].mxu0
  %v380 = vpop.f32.mrb[0].mxu0
  %v381 = vadd.f32 %v340, %v380
  %v382 = vpop.f32.mrb[0].mxu0
  %383 = vdwg.mxu0
  %v384 = vmax.f32 %v378, 0.0
  %v385 = vmax.f32 %v381, 0.0
  %v386 = vpack.c.bf16 %v385, %v384
  %v388 = vunpack.c.l.b16 %v386
  %v389 = vunpack.c.h.b16 %v386
  %v390 = vpack.c.b16 %v388, %v388
  %v391 = vpack.c.b16 %v389, %v389
  %394 = vst [vmem:[%s3] sm:$0xf] %v390
  %395 = vst [vmem:[%s3 + $0x4] sm:$0xf] %v391
  // Predicated region
  $region14: #{dqn_forward.4} parent=0 // pred_check
    _
  $region15: #{dqn_forward.4} parent=0 // pred_check_branch
    %397 = sbr.rel (0) target = $region17
  $region16: #{dqn_forward.4} parent=0 // pred_region
    _
  $region17: #{dqn_forward.4} parent=0 // pred_fallthru
    _
  // Predicated region
  $region18: #{dqn_forward.4} parent=0 // pred_check
    _
  $region19: #{dqn_forward.4} parent=0 // pred_check_branch
    %399 = sbr.rel (0) target = $region21
  $region20: #{dqn_forward.4} parent=0 // pred_region
    _
  $region21: #{dqn_forward.4} parent=0 // pred_fallthru
    _

// kernel: dqn_forward.5
$region0: #{dqn_forward.5}
  #allocation0 [shape = 'u32[]', space=smem, size = 0x4, offset = 0x4, fixed_abs, tag = 'smem constant byte address 0x4 - core index']
  #allocation1 [shape = 'u32[144,128]{1,0:T(1,128)}', space=vmem, size = 0x12000, scoped, tag = 'internal scratch']
  %s0 = inlined_call_operand.vmem [shape: bf16[16,256], index: 0, kind: input, shape index: {}]
  %s1 = inlined_call_operand.vmem [shape: bf16[256,128], index: 1, kind: input, shape index: {}]
  %s2 = inlined_call_operand.vmem [shape: f32[1,128], index: 2, kind: input, shape index: {}]
  %s3 = inlined_call_operand.vmem [shape: f32[16,128], index: 3, kind: output, shape index: {}]
  %s4 = sld [smem:[#allocation0]]
  $region22: #{dqn_forward.5} parent=0
    _
  %s6 = ssub.s32 1, %s4
  %s7 = scalar_select 0, %s6, %s4
  // Predicated region
  $region2: #{dqn_forward.5} parent=0 // pred_check
    _
  $region3: #{dqn_forward.5} parent=0 // pred_check_branch
    %9 = sbr.rel (0) target = $region5
  $region4: #{dqn_forward.5} parent=0 // pred_region
    _
  $region5: #{dqn_forward.5} parent=0 // pred_fallthru
    _
  // Predicated region
  $region6: #{dqn_forward.5} parent=0 // pred_check
    _
  $region7: #{dqn_forward.5} parent=0 // pred_check_branch
    %11 = sbr.rel (0) target = $region9
  $region8: #{dqn_forward.5} parent=0 // pred_region
    _
  $region9: #{dqn_forward.5} parent=0 // pred_fallthru
    _
  // Predicated region
  $region10: #{dqn_forward.5} parent=0 // pred_check
    _
  $region11: #{dqn_forward.5} parent=0 // pred_check_branch
    %13 = sbr.rel (0) target = $region13
  $region12: #{dqn_forward.5} parent=0 // pred_region
    _
  $region13: #{dqn_forward.5} parent=0 // pred_fallthru
    _
  %v15 = vld [vmem:[%s0] sm:$0xff]
  %v16 = vld [vmem:[%s0 + $0x8] sm:$0xff]
  %v17 = vld [vmem:[%s1] sm:$0xf]
  %v18 = vld [vmem:[%s1 + $0x4] sm:$0xf]
  %v19 = vld [vmem:[%s1 + $0x8] sm:$0xf]
  %v20 = vld [vmem:[%s1 + $0xc] sm:$0xf]
  %v21 = vld [vmem:[%s1 + $0x10] sm:$0xf]
  %v22 = vld [vmem:[%s1 + $0x14] sm:$0xf]
  %v23 = vld [vmem:[%s1 + $0x18] sm:$0xf]
  %v24 = vld [vmem:[%s1 + $0x1c] sm:$0xf]
  %v25 = vld [vmem:[%s1 + $0x20] sm:$0xf]
  %v26 = vld [vmem:[%s1 + $0x24] sm:$0xf]
  %v27 = vld [vmem:[%s1 + $0x28] sm:$0xf]
  %v28 = vld [vmem:[%s1 + $0x2c] sm:$0xf]
  %v29 = vld [vmem:[%s1 + $0x30] sm:$0xf]
  %v30 = vld [vmem:[%s1 + $0x34] sm:$0xf]
  %v31 = vld [vmem:[%s1 + $0x38] sm:$0xf]
  %v32 = vld [vmem:[%s1 + $0x3c] sm:$0xf]
  %v33 = vld [vmem:[%s1 + $0x40] sm:$0xf]
  %v34 = vld [vmem:[%s1 + $0x44] sm:$0xf]
  %v35 = vld [vmem:[%s1 + $0x48] sm:$0xf]
  %v36 = vld [vmem:[%s1 + $0x4c] sm:$0xf]
  %v37 = vld [vmem:[%s1 + $0x50] sm:$0xf]
  %v38 = vld [vmem:[%s1 + $0x54] sm:$0xf]
  %v39 = vld [vmem:[%s1 + $0x58] sm:$0xf]
  %v40 = vld [vmem:[%s1 + $0x5c] sm:$0xf]
  %v41 = vld [vmem:[%s1 + $0x60] sm:$0xf]
  %v42 = vld [vmem:[%s1 + $0x64] sm:$0xf]
  %v43 = vld [vmem:[%s1 + $0x68] sm:$0xf]
  %v44 = vld [vmem:[%s1 + $0x6c] sm:$0xf]
  %v45 = vld [vmem:[%s1 + $0x70] sm:$0xf]
  %v46 = vld [vmem:[%s1 + $0x74] sm:$0xf]
  %v47 = vld [vmem:[%s1 + $0x78] sm:$0xf]
  %v48 = vld [vmem:[%s1 + $0x7c] sm:$0xf]
  %v49 = vld [vmem:[%s2] sm:$0x1]
  %v51 = vlaneseq
  %v52 = vshrl.u32 %v51, 7
  %v53 = vsub.s32 0, %v52
  %v54 = vrot.slane %v49, %v53
  %v58 = vunpack.c.l.b16 %v15
  %v59 = vunpack.c.h.b16 %v15
  %v60 = vunpack.c.l.b16 %v16
  %v61 = vunpack.c.h.b16 %v16
  %v62 = vpack.c.b16 %v60, %v58
  %v63 = vpack.c.b16 %v61, %v59
  %v98 = vunpack.c.l.b16 %v17
  %v99 = vunpack.c.l.b16 %v18
  %v100 = vunpack.c.l.b16 %v19
  %v101 = vunpack.c.l.b16 %v20
  %v102 = vunpack.c.l.b16 %v21
  %v103 = vunpack.c.l.b16 %v22
  %v104 = vunpack.c.l.b16 %v23
  %v105 = vunpack.c.l.b16 %v24
  %v106 = vunpack.c.l.b16 %v25
  %v107 = vunpack.c.l.b16 %v26
  %v108 = vunpack.c.l.b16 %v27
  %v109 = vunpack.c.l.b16 %v28
  %v110 = vunpack.c.l.b16 %v29
  %v111 = vunpack.c.l.b16 %v30
  %v112 = vunpack.c.l.b16 %v31
  %v113 = vunpack.c.l.b16 %v32
  %v114 = vunpack.c.l.b16 %v33
  %v115 = vunpack.c.l.b16 %v34
  %v116 = vunpack.c.l.b16 %v35
  %v117 = vunpack.c.l.b16 %v36
  %v118 = vunpack.c.l.b16 %v37
  %v119 = vunpack.c.l.b16 %v38
  %v120 = vunpack.c.l.b16 %v39
  %v121 = vunpack.c.l.b16 %v40
  %v122 = vunpack.c.l.b16 %v41
  %v123 = vunpack.c.l.b16 %v42
  %v124 = vunpack.c.l.b16 %v43
  %v125 = vunpack.c.l.b16 %v44
  %v126 = vunpack.c.l.b16 %v45
  %v127 = vunpack.c.l.b16 %v46
  %v128 = vunpack.c.l.b16 %v47
  %v129 = vunpack.c.l.b16 %v48
  %v130 = vpack.c.b16 %v99, %v98
  %v131 = vpack.c.b16 %v101, %v100
  %v132 = vpack.c.b16 %v103, %v102
  %v133 = vpack.c.b16 %v105, %v104
  %v134 = vpack.c.b16 %v107, %v106
  %v135 = vpack.c.b16 %v109, %v108
  %v136 = vpack.c.b16 %v111, %v110
  %v137 = vpack.c.b16 %v113, %v112
  %v138 = vpack.c.b16 %v115, %v114
  %v139 = vpack.c.b16 %v117, %v116
  %v140 = vpack.c.b16 %v119, %v118
  %v141 = vpack.c.b16 %v121, %v120
  %v142 = vpack.c.b16 %v123, %v122
  %v143 = vpack.c.b16 %v125, %v124
  %v144 = vpack.c.b16 %v127, %v126
  %v145 = vpack.c.b16 %v129, %v128
  %162 = vmatprep.subr.bf16.mxu0 0
  %163 = vmatpush1.bf16.msra.mxu0 %v130
  %164 = vmatprep.subr.bf16.mxu0 0
  %165 = vmatpush1.bf16.msra.mxu0 %v131
  %166 = vmatprep.subr.bf16.mxu0 0
  %167 = vmatpush1.bf16.msra.mxu0 %v132
  %168 = vmatprep.subr.bf16.mxu0 0
  %169 = vmatpush1.bf16.msra.mxu0 %v133
  %170 = vmatprep.subr.bf16.mxu0 0
  %171 = vmatpush1.bf16.msra.mxu0 %v134
  %172 = vmatprep.subr.bf16.mxu0 0
  %173 = vmatpush1.bf16.msra.mxu0 %v135
  %174 = vmatprep.subr.bf16.mxu0 0
  %175 = vmatpush1.bf16.msra.mxu0 %v136
  %176 = vmatprep.subr.bf16.mxu0 0
  %177 = vmatpush1.bf16.msra.mxu0 %v137
  %178 = vmatprep.subr.bf16.mxu0 0
  %179 = vmatpush1.bf16.msra.mxu0 %v138
  %180 = vmatprep.subr.bf16.mxu0 0
  %181 = vmatpush1.bf16.msra.mxu0 %v139
  %182 = vmatprep.subr.bf16.mxu0 0
  %183 = vmatpush1.bf16.msra.mxu0 %v140
  %184 = vmatprep.subr.bf16.mxu0 0
  %185 = vmatpush1.bf16.msra.mxu0 %v141
  %186 = vmatprep.subr.bf16.mxu0 0
  %187 = vmatpush1.bf16.msra.mxu0 %v142
  %188 = vmatprep.subr.bf16.mxu0 0
  %189 = vmatpush1.bf16.msra.mxu0 %v143
  %190 = vmatprep.subr.bf16.mxu0 0
  %191 = vmatpush1.bf16.msra.mxu0 %v144
  %192 = vmatprep.subr.bf16.mxu0 0
  %193 = vmatpush1.bf16.msra.mxu0 %v145
  %194 = vmatprep.mubr.bf16.mxu0 %v63
  %195 = vmatmul.mubr.bf16.gmra.mrb[0].mxu0 %v62
  %v196 = vpop.f32.mrb[0].mxu0
  %v197 = vadd.f32 %v54, %v196
  %v198 = vpop.f32.mrb[0].mxu0
  %v199 = vpop.f32.mrb[0].mxu0
  %v200 = vadd.f32 %v54, %v199
  %v201 = vpop.f32.mrb[0].mxu0
  %202 = vdwg.mxu0
  %203 = vst [vmem:[%s3] sm:$0xff] %v197
  %204 = vst [vmem:[%s3 + $0x8] sm:$0xff] %v200
  // Predicated region
  $region14: #{dqn_forward.5} parent=0 // pred_check
    _
  $region15: #{dqn_forward.5} parent=0 // pred_check_branch
    %206 = sbr.rel (0) target = $region17
  $region16: #{dqn_forward.5} parent=0 // pred_region
    _
  $region17: #{dqn_forward.5} parent=0 // pred_fallthru
    _
  // Predicated region
  $region18: #{dqn_forward.5} parent=0 // pred_check
    _
  $region19: #{dqn_forward.5} parent=0 // pred_check_branch
    %208 = sbr.rel (0) target = $region21
  $region20: #{dqn_forward.5} parent=0 // pred_region
    _
  $region21: #{dqn_forward.5} parent=0 // pred_fallthru
    _

</llo_original>
